<compile_context>
chip_gen: v7x
topology: tpu7x:2x2x1
jax: 0.10.0
libtpu: 0.0.40
codegen_flags: <defaults>
</compile_context>

<pallas_src>
import math
import functools

import jax
import jax.numpy as jnp
from jax.experimental import pallas as pl
from jax.experimental.pallas import tpu as pltpu


def lstm_cell_kernel(x_ref, h_ref, c_ref, wx_ref, wh_ref, b_ref,
                     h_out_ref, c_out_ref):
    H = h_ref.shape[-1]

    # Two accumulating MXU matmuls (no [x,h] concat, no extra VMEM buffer).
    x = x_ref[...].astype(wx_ref.dtype)
    h = h_ref[...].astype(wh_ref.dtype)
    gates = jnp.dot(x, wx_ref[...],
                    preferred_element_type=jnp.float32,
                    precision=jax.lax.Precision.HIGHEST)
    gates = gates + jnp.dot(h, wh_ref[...],
                            preferred_element_type=jnp.float32,
                            precision=jax.lax.Precision.HIGHEST)
    gates = gates + b_ref[...]                                   # (bb, 4H) f32

    i_gate = jax.nn.sigmoid(gates[:, 0 * H:1 * H])
    f_gate = jax.nn.sigmoid(gates[:, 1 * H:2 * H])
    g_gate = jnp.tanh(gates[:, 2 * H:3 * H])
    o_gate = jax.nn.sigmoid(gates[:, 3 * H:4 * H])

    c_prev = c_ref[...].astype(jnp.float32)
    c_next = f_gate * c_prev + i_gate * g_gate                   # f32 state math
    h_next = o_gate * jnp.tanh(c_next)

    h_out_ref[...] = h_next.astype(h_out_ref.dtype)
    c_out_ref[...] = c_next.astype(c_out_ref.dtype)


def prepare_lstm_params(weight_ih, weight_hh, bias_ih, bias_hh):
    """One-time parameter prep (call ONCE, outside any per-step loop).

    weight_ih: (4H, I), weight_hh: (4H, H), biases: (4H,)
    returns:
      w_x: (I, 4H) f32   pre-transposed, for plain `x @ w_x` on the MXU
      w_h: (H, 4H) f32   pre-transposed, for plain `h @ w_h`
      b:   (1, 4H) f32   bias_ih + bias_hh
    """
    w_x = jnp.asarray(weight_ih, jnp.float32).T                  # (I, 4H)
    w_h = jnp.asarray(weight_hh, jnp.float32).T                  # (H, 4H)
    b = (jnp.asarray(bias_ih, jnp.float32)
         + jnp.asarray(bias_hh, jnp.float32)).reshape(1, -1)     # (1, 4H)
    return w_x, w_h, b


@functools.partial(jax.jit, static_argnames=("block_b",))
def lstm_cell(x, h_prev, c_prev, w_x, w_h, b, *, block_b=256):
    """Pallas LSTMCell forward step.

    x: (B, I), h_prev/c_prev: (B, H); w_x/w_h/b from prepare_lstm_params.
    Returns (h_next, c_next) with the dtypes of h_prev / c_prev.
    """
    B, I = x.shape
    H = h_prev.shape[-1]
    assert w_x.shape == (I, 4 * H)
    assert w_h.shape == (H, 4 * H)
    assert b.shape == (1, 4 * H)

    # Batch tile: sublane-aligned, and >=2 grid steps when B > 8 so both v7x
    # TensorCores get work via dimension_semantics=("parallel",).
    if B <= 8:
        bb = B
    else:
        half = ((pl.cdiv(B, 2) + 7) // 8) * 8
        bb = min(block_b, half)
    grid = (pl.cdiv(B, bb),)

    # Scoped-VMEM budget: double-buffered I/O tiles + resident weights (assume
    # double-buffered to be safe) + the f32 gates intermediate, with headroom.
    tile_io_bytes = bb * (I + 4 * H) * 4
    weight_bytes = ((I + H) * 4 * H) * jnp.dtype(w_x.dtype).itemsize + 4 * H * 4
    gates_bytes = bb * 4 * H * 4
    vmem_limit = int(1.25 * (2 * tile_io_bytes + 2 * weight_bytes + gates_bytes))
    vmem_limit = min(100 * 1024 * 1024, max(32 * 1024 * 1024, vmem_limit))

    h_next, c_next = pl.pallas_call(
        lstm_cell_kernel,
        out_shape=(jax.ShapeDtypeStruct((B, H), h_prev.dtype),
                   jax.ShapeDtypeStruct((B, H), c_prev.dtype)),
        grid_spec=pltpu.PrefetchScalarGridSpec(
            num_scalar_prefetch=0,
            grid=grid,
            in_specs=[
                pl.BlockSpec((bb, I), lambda i: (i, 0)),        # x (batch-tiled)
                pl.BlockSpec((bb, H), lambda i: (i, 0)),        # h_prev
                pl.BlockSpec((bb, H), lambda i: (i, 0)),        # c_prev
                pl.BlockSpec((I, 4 * H), lambda i: (0, 0)),     # w_x (resident)
                pl.BlockSpec((H, 4 * H), lambda i: (0, 0)),     # w_h (resident)
                pl.BlockSpec((1, 4 * H), lambda i: (0, 0)),     # bias (resident)
            ],
            out_specs=(pl.BlockSpec((bb, H), lambda i: (i, 0)),
                       pl.BlockSpec((bb, H), lambda i: (i, 0))),
        ),
        compiler_params=pltpu.CompilerParams(
            dimension_semantics=("parallel",),
            vmem_limit_bytes=vmem_limit),
    )(x, h_prev, c_prev, w_x, w_h, b)
    return h_next, c_next


def _reference_f32(x, h_prev, c_prev, weight_ih, weight_hh, bias_ih, bias_hh):
    """Exact module semantics (all f32)."""
    H = h_prev.shape[-1]
    gates = (x @ weight_ih.T + bias_ih) + (h_prev @ weight_hh.T + bias_hh)
    i = jax.nn.sigmoid(gates[:, 0 * H:1 * H])
    f = jax.nn.sigmoid(gates[:, 1 * H:2 * H])
    g = jnp.tanh(gates[:, 2 * H:3 * H])
    o = jax.nn.sigmoid(gates[:, 3 * H:4 * H])
    c_next = f * c_prev + i * g
    h_next = o * jnp.tanh(c_next)
    return h_next, c_next


if __name__ == "__main__":
    batch = 8
    input_size = 16
    hidden_size = 32

    key = jax.random.PRNGKey(0)
    k_x, k_h, k_c, k_wih, k_whh, k_bih, k_bhh = jax.random.split(key, 7)

    # Deterministic parameter init, mimicking reset_parameters (uniform +-stdv).
    stdv = 1.0 / math.sqrt(hidden_size)
    weight_ih = jax.random.uniform(k_wih, (4 * hidden_size, input_size),
                                   jnp.float32, -stdv, stdv)
    weight_hh = jax.random.uniform(k_whh, (4 * hidden_size, hidden_size),
                                   jnp.float32, -stdv, stdv)
    bias_ih = jax.random.uniform(k_bih, (4 * hidden_size,),
                                 jnp.float32, -stdv, stdv)
    bias_hh = jax.random.uniform(k_bhh, (4 * hidden_size,),
                                 jnp.float32, -stdv, stdv)

    x = jax.random.normal(k_x, (batch, input_size), jnp.float32)
    h_prev = jax.random.normal(k_h, (batch, hidden_size), jnp.float32)
    c_prev = jax.random.normal(k_c, (batch, hidden_size), jnp.float32)

    # One-time weight/bias prep (outside the per-step hot path).
    w_x, w_h, b = prepare_lstm_params(weight_ih, weight_hh, bias_ih, bias_hh)

    h_next, c_next = lstm_cell(x, h_prev, c_prev, w_x, w_h, b)
    jax.block_until_ready((h_next, c_next))

    # Tight check against the exact f32 module semantics.
    h_ref, c_ref = _reference_f32(x, h_prev, c_prev,
                                  weight_ih, weight_hh, bias_ih, bias_hh)
    assert jnp.allclose(h_next, h_ref, atol=1e-4, rtol=1e-4), (
        float(jnp.max(jnp.abs(h_next - h_ref))))
    assert jnp.allclose(c_next, c_ref, atol=1e-4, rtol=1e-4), (
        float(jnp.max(jnp.abs(c_next - c_ref))))

    print("KERNEL_OK")
</pallas_src>

<mosaic_0001>
module attributes {stable_mosaic.version = 11 : i64} {
  func.func @lstm_cell_kernel(%arg0: i32, %arg1: memref<8x16xf32, #tpu.memory_space<vmem>>, %arg2: memref<8x32xf32, #tpu.memory_space<vmem>>, %arg3: memref<8x32xf32, #tpu.memory_space<vmem>>, %arg4: memref<16x128xf32, #tpu.memory_space<vmem>>, %arg5: memref<32x128xf32, #tpu.memory_space<vmem>>, %arg6: memref<1x128xf32, #tpu.memory_space<vmem>>, %arg7: memref<8x32xf32, #tpu.memory_space<vmem>>, %arg8: memref<8x32xf32, #tpu.memory_space<vmem>>) attributes {dimension_semantics = [#tpu.dimension_semantics<parallel>], iteration_bounds = array<i64: 1>, scalar_prefetch = 0 : i64, scratch_operands = 0 : i64, tpu.core_type = #tpu.core_type<tc>, window_params = [{transform_indices = @transform_0, window_bounds = array<i64: 8, 16>}, {transform_indices = @transform_1, window_bounds = array<i64: 8, 32>}, {transform_indices = @transform_2, window_bounds = array<i64: 8, 32>}, {pipeline_mode = #tpu.pipeline_mode<synchronous>, transform_indices = @transform_3, window_bounds = array<i64: 16, 128>}, {pipeline_mode = #tpu.pipeline_mode<synchronous>, transform_indices = @transform_4, window_bounds = array<i64: 32, 128>}, {pipeline_mode = #tpu.pipeline_mode<synchronous>, transform_indices = @transform_5, window_bounds = array<i64: 1, 128>}, {transform_indices = @transform_6, window_bounds = array<i64: 8, 32>}, {transform_indices = @transform_7, window_bounds = array<i64: 8, 32>}]} {
    %c0 = arith.constant 0 : index
    %c0_0 = arith.constant 0 : index
    %0 = vector.load %arg1[%c0, %c0_0] : memref<8x16xf32, #tpu.memory_space<vmem>>, vector<8x16xf32>
    %c0_1 = arith.constant 0 : index
    %c0_2 = arith.constant 0 : index
    %1 = vector.load %arg2[%c0_1, %c0_2] : memref<8x32xf32, #tpu.memory_space<vmem>>, vector<8x32xf32>
    %c0_3 = arith.constant 0 : index
    %c0_4 = arith.constant 0 : index
    %2 = vector.load %arg4[%c0_3, %c0_4] : memref<16x128xf32, #tpu.memory_space<vmem>>, vector<16x128xf32>
    %cst = arith.constant dense<0.000000e+00> : vector<8x128xf32>
    %3 = tpu.matmul %0, %2, %cst {dimension_numbers = #tpu.dot_dimension_numbers<[1], [0], [0], [1], [0, 0, 1, 1], [], []>, precision = #tpu.contract_precision<fp32>} : vector<8x16xf32>, vector<16x128xf32>, vector<8x128xf32> -> vector<8x128xf32>
    %c0_5 = arith.constant 0 : index
    %c0_6 = arith.constant 0 : index
    %4 = vector.load %arg5[%c0_5, %c0_6] : memref<32x128xf32, #tpu.memory_space<vmem>>, vector<32x128xf32>
    %cst_7 = arith.constant dense<0.000000e+00> : vector<8x128xf32>
    %5 = tpu.matmul %1, %4, %cst_7 {dimension_numbers = #tpu.dot_dimension_numbers<[1], [0], [0], [1], [0, 0, 1, 1], [], []>, precision = #tpu.contract_precision<fp32>} : vector<8x32xf32>, vector<32x128xf32>, vector<8x128xf32> -> vector<8x128xf32>
    %6 = arith.addf %3, %5 : vector<8x128xf32>
    %c0_8 = arith.constant 0 : index
    %c0_9 = arith.constant 0 : index
    %7 = vector.load %arg6[%c0_8, %c0_9] : memref<1x128xf32, #tpu.memory_space<vmem>>, vector<1x128xf32>
    %8 = vector.broadcast %7 : vector<1x128xf32> to vector<8x128xf32>
    %9 = arith.addf %6, %8 : vector<8x128xf32>
    %10 = vector.extract_strided_slice %9 {offsets = [0, 0], sizes = [8, 32], strides = [1, 1]} : vector<8x128xf32> to vector<8x32xf32>
    %11 = arith.negf %10 : vector<8x32xf32>
    %12 = math.exp %11 : vector<8x32xf32>
    %cst_10 = arith.constant 1.000000e+00 : f32
    %13 = vector.broadcast %cst_10 : f32 to vector<8x32xf32>
    %14 = arith.addf %13, %12 : vector<8x32xf32>
    %15 = arith.divf %13, %14 : vector<8x32xf32>
    %16 = vector.extract_strided_slice %9 {offsets = [0, 32], sizes = [8, 32], strides = [1, 1]} : vector<8x128xf32> to vector<8x32xf32>
    %17 = arith.negf %16 : vector<8x32xf32>
    %18 = math.exp %17 : vector<8x32xf32>
    %cst_11 = arith.constant 1.000000e+00 : f32
    %19 = vector.broadcast %cst_11 : f32 to vector<8x32xf32>
    %20 = arith.addf %19, %18 : vector<8x32xf32>
    %21 = arith.divf %19, %20 : vector<8x32xf32>
    %22 = vector.extract_strided_slice %9 {offsets = [0, 64], sizes = [8, 32], strides = [1, 1]} : vector<8x128xf32> to vector<8x32xf32>
    %23 = math.tanh %22 : vector<8x32xf32>
    %24 = vector.extract_strided_slice %9 {offsets = [0, 96], sizes = [8, 32], strides = [1, 1]} : vector<8x128xf32> to vector<8x32xf32>
    %25 = arith.negf %24 : vector<8x32xf32>
    %26 = math.exp %25 : vector<8x32xf32>
    %cst_12 = arith.constant 1.000000e+00 : f32
    %27 = vector.broadcast %cst_12 : f32 to vector<8x32xf32>
    %28 = arith.addf %27, %26 : vector<8x32xf32>
    %29 = arith.divf %27, %28 : vector<8x32xf32>
    %c0_13 = arith.constant 0 : index
    %c0_14 = arith.constant 0 : index
    %30 = vector.load %arg3[%c0_13, %c0_14] : memref<8x32xf32, #tpu.memory_space<vmem>>, vector<8x32xf32>
    %31 = arith.mulf %21, %30 : vector<8x32xf32>
    %32 = arith.mulf %15, %23 : vector<8x32xf32>
    %33 = arith.addf %31, %32 : vector<8x32xf32>
    %34 = math.tanh %33 : vector<8x32xf32>
    %35 = arith.mulf %29, %34 : vector<8x32xf32>
    %c0_15 = arith.constant 0 : index
    %c0_16 = arith.constant 0 : index
    %36 = vector.load %arg7[%c0_15, %c0_16] : memref<8x32xf32, #tpu.memory_space<vmem>>, vector<8x32xf32>
    tpu.vector_store %arg7[%c0_15, %c0_16], %35 {strides = array<i32>} : memref<8x32xf32, #tpu.memory_space<vmem>>, vector<8x32xf32>,
    %c0_17 = arith.constant 0 : index
    %c0_18 = arith.constant 0 : index
    %37 = vector.load %arg8[%c0_17, %c0_18] : memref<8x32xf32, #tpu.memory_space<vmem>>, vector<8x32xf32>
    tpu.vector_store %arg8[%c0_17, %c0_18], %33 {strides = array<i32>} : memref<8x32xf32, #tpu.memory_space<vmem>>, vector<8x32xf32>,
    return
  }
  func.func @transform_0(%arg0: i32) -> (i32, i32) {
    %c0_i32 = arith.constant 0 : i32
    %c0_i32_0 = arith.constant 0 : i32
    return %arg0, %c0_i32 : i32, i32
  }
  func.func @transform_1(%arg0: i32) -> (i32, i32) {
    %c0_i32 = arith.constant 0 : i32
    %c0_i32_0 = arith.constant 0 : i32
    return %arg0, %c0_i32 : i32, i32
  }
  func.func @transform_2(%arg0: i32) -> (i32, i32) {
    %c0_i32 = arith.constant 0 : i32
    %c0_i32_0 = arith.constant 0 : i32
    return %arg0, %c0_i32 : i32, i32
  }
  func.func @transform_3(%arg0: i32) -> (i32, i32) {
    %c0_i32 = arith.constant 0 : i32
    %c0_i32_0 = arith.constant 0 : i32
    %c0_i32_1 = arith.constant 0 : i32
    return %c0_i32, %c0_i32_0 : i32, i32
  }
  func.func @transform_4(%arg0: i32) -> (i32, i32) {
    %c0_i32 = arith.constant 0 : i32
    %c0_i32_0 = arith.constant 0 : i32
    %c0_i32_1 = arith.constant 0 : i32
    return %c0_i32, %c0_i32_0 : i32, i32
  }
  func.func @transform_5(%arg0: i32) -> (i32, i32) {
    %c0_i32 = arith.constant 0 : i32
    %c0_i32_0 = arith.constant 0 : i32
    %c0_i32_1 = arith.constant 0 : i32
    return %c0_i32, %c0_i32_0 : i32, i32
  }
  func.func @transform_6(%arg0: i32) -> (i32, i32) {
    %c0_i32 = arith.constant 0 : i32
    %c0_i32_0 = arith.constant 0 : i32
    return %arg0, %c0_i32 : i32, i32
  }
  func.func @transform_7(%arg0: i32) -> (i32, i32) {
    %c0_i32 = arith.constant 0 : i32
    %c0_i32_0 = arith.constant 0 : i32
    return %arg0, %c0_i32 : i32, i32
  }
}

</mosaic_0001>

<llo_original>
// kernel: lstm_cell.1
$region0: #{lstm_cell.1}
  #allocation0 [shape = 'u32[]', space=smem, size = 0x4, offset = 0x4, fixed_abs, tag = 'smem constant byte address 0x4 - core index']
  #allocation1 [shape = 'u32[144,128]{1,0:T(1,128)}', space=vmem, size = 0x12000, scoped, tag = 'internal scratch']
  %s0 = inlined_call_operand.hbm [shape: f32[8,16], index: 0, kind: input, shape index: {}]
  %s1 = inlined_call_operand.hbm [shape: f32[8,32], index: 1, kind: input, shape index: {}]
  %s2 = inlined_call_operand.hbm [shape: f32[8,32], index: 2, kind: input, shape index: {}]
  %s3 = inlined_call_operand.hbm [shape: f32[16,128], index: 3, kind: input, shape index: {}]
  %s4 = inlined_call_operand.hbm [shape: f32[32,128], index: 4, kind: input, shape index: {}]
  %s5 = inlined_call_operand.vmem [shape: f32[1,128], index: 5, kind: input, shape index: {}]
  %s6 = inlined_call_operand.hbm [shape: f32[8,32], index: 6, kind: output, shape index: {0}]
  %s7 = inlined_call_operand.hbm [shape: f32[8,32], index: 7, kind: output, shape index: {1}]
  %8 = xla_tuple %s6, %s7
  %s9 = sld [smem:[#allocation0]]
  $region62: #{lstm_cell.1} parent=0
    _
  %s11 = ssub.s32 1, %s9
  %s12 = scalar_select 0, %s11, %s9
  $region1: #{lstm_cell.1} parent=0
    #allocation2 [shape = 'u8[4096]{0}', space=vmem, size = 0x1000, scoped, tag = 'input window, operand 0, single buffered']
    #allocation3 [shape = 's32[1]{0}', space=sflag, size = 0x4, scoped, tag = 'scoped memory for lstm_cell.1']
    #allocation4 [shape = 's32[1]{0}', space=sflag, size = 0x4, scoped, tag = 'scoped memory for lstm_cell.1']
    #allocation5 [shape = 'u8[4096]{0}', space=vmem, size = 0x1000, scoped, tag = 'input window, operand 1, single buffered']
    #allocation6 [shape = 's32[1]{0}', space=sflag, size = 0x4, scoped, tag = 'scoped memory for lstm_cell.1']
    #allocation7 [shape = 'u8[4096]{0}', space=vmem, size = 0x1000, scoped, tag = 'input window, operand 2, single buffered']
    #allocation8 [shape = 'u8[8192]{0}', space=vmem, size = 0x2000, scoped, tag = 'input window, operand 3, single buffered']
    #allocation9 [shape = 's32[1]{0}', space=sflag, size = 0x4, scoped, tag = 'scoped memory for lstm_cell.1']
    #allocation10 [shape = 'u8[16384]{0}', space=vmem, size = 0x4000, scoped, tag = 'input window, operand 4, single buffered']
    #allocation11 [shape = 'u8[4096]{0}', space=vmem, size = 0x1000, scoped, tag = 'output window, operand 0, single buffered']
    #allocation12 [shape = 'u8[4096]{0}', space=vmem, size = 0x1000, scoped, tag = 'output window, operand 1, single buffered']
    #allocation13 [shape = 's32[1]{0}', space=sflag, size = 0x4, scoped, tag = 'scoped memory for lstm_cell.1']
    %13 = vsyncpa [#allocation3], 0
    %14 = vsyncpa [#allocation6], 0
    %15 = vsyncpa [#allocation9], 0
    %16 = vsyncpa [#allocation4], 0
    %17 = vsyncpa [#allocation13], 0
    // Predicated region
    $region2: #{lstm_cell.1} parent=1 // pred_check
      _
    $region3: #{lstm_cell.1} parent=1 // pred_check_branch
      %19 = sbr.rel (0) target = $region5
    $region4: #{lstm_cell.1} parent=1 // pred_region
      %s21 = ssub.s32 128, 128
      %22 = vsyncadd [#allocation3], %s21
      %s24 = sshll.u32 [#allocation2], 4
      %s25 = int_to_ptr.vmem [resolvable:$true] %s24
      %27 = dma.hbm_to_vmem [thread:$0]  %s0, 128, %s25, [#allocation3]
    $region5: #{lstm_cell.1} parent=1 // pred_fallthru
      _
    // Predicated region
    $region6: #{lstm_cell.1} parent=1 // pred_check
      _
    $region7: #{lstm_cell.1} parent=1 // pred_check_branch
      %29 = sbr.rel (0) target = $region9
    $region8: #{lstm_cell.1} parent=1 // pred_region
      %s31 = ssub.s32 128, 128
      %32 = vsyncadd [#allocation6], %s31
      %s34 = sshll.u32 [#allocation5], 4
      %s35 = int_to_ptr.vmem [resolvable:$true] %s34
      %37 = dma.hbm_to_vmem [thread:$0]  %s1, 128, %s35, [#allocation6]
    $region9: #{lstm_cell.1} parent=1 // pred_fallthru
      _
    // Predicated region
    $region10: #{lstm_cell.1} parent=1 // pred_check
      _
    $region11: #{lstm_cell.1} parent=1 // pred_check_branch
      %39 = sbr.rel (0) target = $region13
    $region12: #{lstm_cell.1} parent=1 // pred_region
      %s41 = ssub.s32 128, 128
      %42 = vsyncadd [#allocation6], %s41
      %s44 = sshll.u32 [#allocation7], 4
      %s45 = int_to_ptr.vmem [resolvable:$true] %s44
      %47 = dma.hbm_to_vmem [thread:$0]  %s2, 128, %s45, [#allocation6]
    $region13: #{lstm_cell.1} parent=1 // pred_fallthru
      _
    // Predicated region
    $region14: #{lstm_cell.1} parent=1 // pred_check
      _
    $region15: #{lstm_cell.1} parent=1 // pred_check_branch
      %49 = sbr.rel (0) target = $region17
    $region16: #{lstm_cell.1} parent=1 // pred_region
      %s51 = ssub.s32 256, 256
      %52 = vsyncadd [#allocation9], %s51
      %s53 = sshll.u32 [#allocation8], 4
      %s54 = int_to_ptr.vmem [resolvable:$true] %s53
      %59 = dma.hbm_to_vmem [thread:$0]  %s3, 256, %s54, [#allocation9], 128, 128, 8
    $region17: #{lstm_cell.1} parent=1 // pred_fallthru
      _
    // Predicated region
    $region18: #{lstm_cell.1} parent=1 // pred_check
      _
    $region19: #{lstm_cell.1} parent=1 // pred_check_branch
      %61 = sbr.rel (0) target = $region21
    $region20: #{lstm_cell.1} parent=1 // pred_region
      %s63 = ssub.s32 512, 512
      %64 = vsyncadd [#allocation9], %s63
      %s65 = sshll.u32 [#allocation10], 4
      %s66 = int_to_ptr.vmem [resolvable:$true] %s65
      %71 = dma.hbm_to_vmem [thread:$0]  %s4, 512, %s66, [#allocation9], 128, 128, 8
    $region21: #{lstm_cell.1} parent=1 // pred_fallthru
      _
    // Predicated region
    $region22: #{lstm_cell.1} parent=1 // pred_check
      _
    $region23: #{lstm_cell.1} parent=1 // pred_check_branch
      %73 = sbr.rel (0) target = $region25
    $region24: #{lstm_cell.1} parent=1 // pred_region
      _
    $region25: #{lstm_cell.1} parent=1 // pred_fallthru
      _
    // Predicated region
    $region26: #{lstm_cell.1} parent=1 // pred_check
      _
    $region27: #{lstm_cell.1} parent=1 // pred_check_branch
      %75 = sbr.rel (0) target = $region29
    $region28: #{lstm_cell.1} parent=1 // pred_region
      %76 = dma.done [#allocation3], 128
    $region29: #{lstm_cell.1} parent=1 // pred_fallthru
      _
    // Predicated region
    $region30: #{lstm_cell.1} parent=1 // pred_check
      _
    $region31: #{lstm_cell.1} parent=1 // pred_check_branch
      %78 = sbr.rel (0) target = $region33
    $region32: #{lstm_cell.1} parent=1 // pred_region
      %79 = dma.done [#allocation6], 128
    $region33: #{lstm_cell.1} parent=1 // pred_fallthru
      _
    // Predicated region
    $region34: #{lstm_cell.1} parent=1 // pred_check
      _
    $region35: #{lstm_cell.1} parent=1 // pred_check_branch
      %81 = sbr.rel (0) target = $region37
    $region36: #{lstm_cell.1} parent=1 // pred_region
      %82 = dma.done [#allocation6], 128
    $region37: #{lstm_cell.1} parent=1 // pred_fallthru
      _
    // Predicated region
    $region38: #{lstm_cell.1} parent=1 // pred_check
      _
    $region39: #{lstm_cell.1} parent=1 // pred_check_branch
      %84 = sbr.rel (0) target = $region41
    $region40: #{lstm_cell.1} parent=1 // pred_region
      %85 = dma.done [#allocation9], 256
    $region41: #{lstm_cell.1} parent=1 // pred_fallthru
      _
    // Predicated region
    $region42: #{lstm_cell.1} parent=1 // pred_check
      _
    $region43: #{lstm_cell.1} parent=1 // pred_check_branch
      %87 = sbr.rel (0) target = $region45
    $region44: #{lstm_cell.1} parent=1 // pred_region
      %88 = dma.done [#allocation9], 512
    $region45: #{lstm_cell.1} parent=1 // pred_fallthru
      _
    %v89 = vld [vmem:[#allocation2] sm:$0xff]
    %v90 = vld [vmem:[#allocation5] sm:$0xff]
    %v91 = vld [vmem:[#allocation8] sm:$0xff]
    %v92 = vld [vmem:[#allocation8 + $0x8] sm:$0xff]
    %v93 = vld [vmem:[#allocation10] sm:$0xff]
    %v94 = vld [vmem:[#allocation10 + $0x8] sm:$0xff]
    %v95 = vld [vmem:[#allocation10 + $0x10] sm:$0xff]
    %v96 = vld [vmem:[#allocation10 + $0x18] sm:$0xff]
    %vm97 = vcmask 261120
    %v99 = vsel %vm97, %v90, 0
    %101 = vmatprep.subr.mxu0 0.0
    %v102 = vand.u32 %v93, 4294901760
    %103 = vmatpush1.msra.mxu0 %v102
    %104 = vmatprep.subr.mxu0 0.0
    %v105 = vand.u32 %v94, 4294901760
    %106 = vmatpush1.msra.mxu0 %v105
    %107 = vmatprep.subr.mxu0 0.0
    %v108 = vand.u32 %v95, 4294901760
    %109 = vmatpush1.msra.mxu0 %v108
    %110 = vmatprep.subr.mxu0 0.0
    %v111 = vand.u32 %v96, 4294901760
    %112 = vmatpush1.msra.mxu0 %v111
    %113 = vmatprep.subr.mxu0 0.0
    %114 = vmatpush1.msra.mxu0 0.0
    %115 = vmatprep.subr.mxu0 0.0
    %116 = vmatpush1.msra.mxu0 0.0
    %117 = vmatprep.subr.mxu0 0.0
    %118 = vmatpush1.msra.mxu0 0.0
    %119 = vmatprep.subr.mxu0 0.0
    %120 = vmatpush1.msra.mxu0 0.0
    %121 = vmatprep.subr.mxu0 0.0
    %122 = vmatpush1.msra.mxu0 0.0
    %123 = vmatprep.subr.mxu0 0.0
    %124 = vmatpush1.msra.mxu0 0.0
    %125 = vmatprep.subr.mxu0 0.0
    %126 = vmatpush1.msra.mxu0 0.0
    %127 = vmatprep.subr.mxu0 0.0
    %128 = vmatpush1.msra.mxu0 0.0
    %129 = vmatprep.subr.mxu0 0.0
    %130 = vmatpush1.msra.mxu0 0.0
    %131 = vmatprep.subr.mxu0 0.0
    %132 = vmatpush1.msra.mxu0 0.0
    %133 = vmatprep.subr.mxu0 0.0
    %134 = vmatpush1.msra.mxu0 0.0
    %135 = vmatprep.subr.mxu0 0.0
    %136 = vmatpush1.msra.mxu0 0.0
    %137 = vmatprep.subr.mxu0 0.0
    %138 = vmatpush1.msra.mxu0 0.0
    %139 = vmatprep.subr.mxu0 0.0
    %140 = vmatpush1.msra.mxu0 0.0
    %141 = vmatprep.subr.mxu0 0.0
    %142 = vmatpush1.msra.mxu0 0.0
    %143 = vmatprep.subr.mxu0 0.0
    %144 = vmatpush1.msra.mxu0 0.0
    %145 = vmatprep.subr.mxu0 0.0
    %146 = vmatpush1.msra.mxu0 0.0
    %147 = vmatprep.subr.mxu0 0.0
    %148 = vmatpush1.msra.mxu0 0.0
    %149 = vmatprep.subr.mxu0 0.0
    %150 = vmatpush1.msra.mxu0 0.0
    %151 = vmatprep.subr.mxu0 0.0
    %152 = vmatpush1.msra.mxu0 0.0
    %153 = vmatprep.subr.mxu0 0.0
    %154 = vmatpush1.msra.mxu0 0.0
    %155 = vmatprep.subr.mxu0 0.0
    %156 = vmatpush1.msra.mxu0 0.0
    %157 = vmatprep.subr.mxu0 0.0
    %158 = vmatpush1.msra.mxu0 0.0
    %159 = vmatprep.subr.mxu0 0.0
    %160 = vmatpush1.msra.mxu0 0.0
    %161 = vmatprep.subr.mxu0 0.0
    %162 = vmatpush1.msra.mxu0 0.0
    %163 = vmatprep.subr.mxu0 0.0
    %164 = vmatpush1.msra.mxu0 0.0
    %165 = vmatprep.subr.mxu0 0.0
    %166 = vmatpush1.msra.mxu0 0.0
    %167 = vmatprep.subr.mxu0 0.0
    %168 = vmatpush1.msra.mxu0 0.0
    %169 = vmatprep.mubr.f32.mxu0 0.0
    %v170 = vand.u32 %v99, 4294901760
    %v171 = vsub.f32 %v99, %v170
    %v172 = vand.u32 %v171, 4294901760
    %v173 = vsub.f32 %v171, %v172
    %v174 = vand.u32 %v173, 4294901760
    %175 = vmatmul.mubr.f32.gmra.mrb[0].mxu0 %v174
    %v176 = vpop.f32.mrb[0].mxu0
    %v177 = vadd.f32 0.0, %v176
    %v178 = vpop.f32.mrb[0].mxu0
    %179 = vdwg.mxu0
    %180 = vmatprep.subr.mxu0 0.0
    %v181 = vand.u32 %v93, 4294901760
    %v182 = vsub.f32 %v93, %v181
    %v183 = vand.u32 %v182, 4294901760
    %v184 = vsub.f32 %v182, %v183
    %v185 = vand.u32 %v184, 4294901760
    %186 = vmatpush1.msra.mxu0 %v185
    %187 = vmatprep.subr.mxu0 0.0
    %v188 = vand.u32 %v94, 4294901760
    %v189 = vsub.f32 %v94, %v188
    %v190 = vand.u32 %v189, 4294901760
    %v191 = vsub.f32 %v189, %v190
    %v192 = vand.u32 %v191, 4294901760
    %193 = vmatpush1.msra.mxu0 %v192
    %194 = vmatprep.subr.mxu0 0.0
    %v195 = vand.u32 %v95, 4294901760
    %v196 = vsub.f32 %v95, %v195
    %v197 = vand.u32 %v196, 4294901760
    %v198 = vsub.f32 %v196, %v197
    %v199 = vand.u32 %v198, 4294901760
    %200 = vmatpush1.msra.mxu0 %v199
    %201 = vmatprep.subr.mxu0 0.0
    %v202 = vand.u32 %v96, 4294901760
    %v203 = vsub.f32 %v96, %v202
    %v204 = vand.u32 %v203, 4294901760
    %v205 = vsub.f32 %v203, %v204
    %v206 = vand.u32 %v205, 4294901760
    %207 = vmatpush1.msra.mxu0 %v206
    %208 = vmatprep.subr.mxu0 0.0
    %209 = vmatpush1.msra.mxu0 0.0
    %210 = vmatprep.subr.mxu0 0.0
    %211 = vmatpush1.msra.mxu0 0.0
    %212 = vmatprep.subr.mxu0 0.0
    %213 = vmatpush1.msra.mxu0 0.0
    %214 = vmatprep.subr.mxu0 0.0
    %215 = vmatpush1.msra.mxu0 0.0
    %216 = vmatprep.subr.mxu0 0.0
    %217 = vmatpush1.msra.mxu0 0.0
    %218 = vmatprep.subr.mxu0 0.0
    %219 = vmatpush1.msra.mxu0 0.0
    %220 = vmatprep.subr.mxu0 0.0
    %221 = vmatpush1.msra.mxu0 0.0
    %222 = vmatprep.subr.mxu0 0.0
    %223 = vmatpush1.msra.mxu0 0.0
    %224 = vmatprep.subr.mxu0 0.0
    %225 = vmatpush1.msra.mxu0 0.0
    %226 = vmatprep.subr.mxu0 0.0
    %227 = vmatpush1.msra.mxu0 0.0
    %228 = vmatprep.subr.mxu0 0.0
    %229 = vmatpush1.msra.mxu0 0.0
    %230 = vmatprep.subr.mxu0 0.0
    %231 = vmatpush1.msra.mxu0 0.0
    %232 = vmatprep.subr.mxu0 0.0
    %233 = vmatpush1.msra.mxu0 0.0
    %234 = vmatprep.subr.mxu0 0.0
    %235 = vmatpush1.msra.mxu0 0.0
    %236 = vmatprep.subr.mxu0 0.0
    %237 = vmatpush1.msra.mxu0 0.0
    %238 = vmatprep.subr.mxu0 0.0
    %239 = vmatpush1.msra.mxu0 0.0
    %240 = vmatprep.subr.mxu0 0.0
    %241 = vmatpush1.msra.mxu0 0.0
    %242 = vmatprep.subr.mxu0 0.0
    %243 = vmatpush1.msra.mxu0 0.0
    %244 = vmatprep.subr.mxu0 0.0
    %245 = vmatpush1.msra.mxu0 0.0
    %246 = vmatprep.subr.mxu0 0.0
    %247 = vmatpush1.msra.mxu0 0.0
    %248 = vmatprep.subr.mxu0 0.0
    %249 = vmatpush1.msra.mxu0 0.0
    %250 = vmatprep.subr.mxu0 0.0
    %251 = vmatpush1.msra.mxu0 0.0
    %252 = vmatprep.subr.mxu0 0.0
    %253 = vmatpush1.msra.mxu0 0.0
    %254 = vmatprep.subr.mxu0 0.0
    %255 = vmatpush1.msra.mxu0 0.0
    %256 = vmatprep.subr.mxu0 0.0
    %257 = vmatpush1.msra.mxu0 0.0
    %258 = vmatprep.subr.mxu0 0.0
    %259 = vmatpush1.msra.mxu0 0.0
    %260 = vmatprep.subr.mxu0 0.0
    %261 = vmatpush1.msra.mxu0 0.0
    %262 = vmatprep.subr.mxu0 0.0
    %263 = vmatpush1.msra.mxu0 0.0
    %264 = vmatprep.mubr.f32.mxu0 0.0
    %v265 = vand.u32 %v99, 4294901760
    %266 = vmatmul.mubr.f32.gmra.mrb[0].mxu0 %v265
    %v267 = vpop.f32.mrb[0].mxu0
    %v268 = vadd.f32 %v177, %v267
    %v269 = vpop.f32.mrb[0].mxu0
    %270 = vdwg.mxu0
    %271 = vmatprep.subr.mxu0 0.0
    %v272 = vand.u32 %v93, 4294901760
    %v273 = vsub.f32 %v93, %v272
    %274 = vmatpush1.msra.mxu0 %v273
    %275 = vmatprep.subr.mxu0 0.0
    %v276 = vand.u32 %v94, 4294901760
    %v277 = vsub.f32 %v94, %v276
    %278 = vmatpush1.msra.mxu0 %v277
    %279 = vmatprep.subr.mxu0 0.0
    %v280 = vand.u32 %v95, 4294901760
    %v281 = vsub.f32 %v95, %v280
    %282 = vmatpush1.msra.mxu0 %v281
    %283 = vmatprep.subr.mxu0 0.0
    %v284 = vand.u32 %v96, 4294901760
    %v285 = vsub.f32 %v96, %v284
    %286 = vmatpush1.msra.mxu0 %v285
    %287 = vmatprep.subr.mxu0 0.0
    %288 = vmatpush1.msra.mxu0 0.0
    %289 = vmatprep.subr.mxu0 0.0
    %290 = vmatpush1.msra.mxu0 0.0
    %291 = vmatprep.subr.mxu0 0.0
    %292 = vmatpush1.msra.mxu0 0.0
    %293 = vmatprep.subr.mxu0 0.0
    %294 = vmatpush1.msra.mxu0 0.0
    %295 = vmatprep.subr.mxu0 0.0
    %296 = vmatpush1.msra.mxu0 0.0
    %297 = vmatprep.subr.mxu0 0.0
    %298 = vmatpush1.msra.mxu0 0.0
    %299 = vmatprep.subr.mxu0 0.0
    %300 = vmatpush1.msra.mxu0 0.0
    %301 = vmatprep.subr.mxu0 0.0
    %302 = vmatpush1.msra.mxu0 0.0
    %303 = vmatprep.subr.mxu0 0.0
    %304 = vmatpush1.msra.mxu0 0.0
    %305 = vmatprep.subr.mxu0 0.0
    %306 = vmatpush1.msra.mxu0 0.0
    %307 = vmatprep.subr.mxu0 0.0
    %308 = vmatpush1.msra.mxu0 0.0
    %309 = vmatprep.subr.mxu0 0.0
    %310 = vmatpush1.msra.mxu0 0.0
    %311 = vmatprep.subr.mxu0 0.0
    %312 = vmatpush1.msra.mxu0 0.0
    %313 = vmatprep.subr.mxu0 0.0
    %314 = vmatpush1.msra.mxu0 0.0
    %315 = vmatprep.subr.mxu0 0.0
    %316 = vmatpush1.msra.mxu0 0.0
    %317 = vmatprep.subr.mxu0 0.0
    %318 = vmatpush1.msra.mxu0 0.0
    %319 = vmatprep.subr.mxu0 0.0
    %320 = vmatpush1.msra.mxu0 0.0
    %321 = vmatprep.subr.mxu0 0.0
    %322 = vmatpush1.msra.mxu0 0.0
    %323 = vmatprep.subr.mxu0 0.0
    %324 = vmatpush1.msra.mxu0 0.0
    %325 = vmatprep.subr.mxu0 0.0
    %326 = vmatpush1.msra.mxu0 0.0
    %327 = vmatprep.subr.mxu0 0.0
    %328 = vmatpush1.msra.mxu0 0.0
    %329 = vmatprep.subr.mxu0 0.0
    %330 = vmatpush1.msra.mxu0 0.0
    %331 = vmatprep.subr.mxu0 0.0
    %332 = vmatpush1.msra.mxu0 0.0
    %333 = vmatprep.subr.mxu0 0.0
    %334 = vmatpush1.msra.mxu0 0.0
    %335 = vmatprep.subr.mxu0 0.0
    %336 = vmatpush1.msra.mxu0 0.0
    %337 = vmatprep.subr.mxu0 0.0
    %338 = vmatpush1.msra.mxu0 0.0
    %339 = vmatprep.subr.mxu0 0.0
    %340 = vmatpush1.msra.mxu0 0.0
    %341 = vmatprep.subr.mxu0 0.0
    %342 = vmatpush1.msra.mxu0 0.0
    %343 = vmatprep.mubr.f32.mxu0 0.0
    %v344 = vand.u32 %v99, 4294901760
    %v345 = vsub.f32 %v99, %v344
    %346 = vmatmul.mubr.f32.gmra.mrb[0].mxu0 %v345
    %v347 = vpop.f32.mrb[0].mxu0
    %v348 = vadd.f32 %v268, %v347
    %v349 = vpop.f32.mrb[0].mxu0
    %350 = vdwg.mxu0
    %351 = vmatprep.subr.mxu0 0.0
    %v352 = vand.u32 %v93, 4294901760
    %353 = vmatpush1.msra.mxu0 %v352
    %354 = vmatprep.subr.mxu0 0.0
    %v355 = vand.u32 %v94, 4294901760
    %356 = vmatpush1.msra.mxu0 %v355
    %357 = vmatprep.subr.mxu0 0.0
    %v358 = vand.u32 %v95, 4294901760
    %359 = vmatpush1.msra.mxu0 %v358
    %360 = vmatprep.subr.mxu0 0.0
    %v361 = vand.u32 %v96, 4294901760
    %362 = vmatpush1.msra.mxu0 %v361
    %363 = vmatprep.subr.mxu0 0.0
    %364 = vmatpush1.msra.mxu0 0.0
    %365 = vmatprep.subr.mxu0 0.0
    %366 = vmatpush1.msra.mxu0 0.0
    %367 = vmatprep.subr.mxu0 0.0
    %368 = vmatpush1.msra.mxu0 0.0
    %369 = vmatprep.subr.mxu0 0.0
    %370 = vmatpush1.msra.mxu0 0.0
    %371 = vmatprep.subr.mxu0 0.0
    %372 = vmatpush1.msra.mxu0 0.0
    %373 = vmatprep.subr.mxu0 0.0
    %374 = vmatpush1.msra.mxu0 0.0
    %375 = vmatprep.subr.mxu0 0.0
    %376 = vmatpush1.msra.mxu0 0.0
    %377 = vmatprep.subr.mxu0 0.0
    %378 = vmatpush1.msra.mxu0 0.0
    %379 = vmatprep.subr.mxu0 0.0
    %380 = vmatpush1.msra.mxu0 0.0
    %381 = vmatprep.subr.mxu0 0.0
    %382 = vmatpush1.msra.mxu0 0.0
    %383 = vmatprep.subr.mxu0 0.0
    %384 = vmatpush1.msra.mxu0 0.0
    %385 = vmatprep.subr.mxu0 0.0
    %386 = vmatpush1.msra.mxu0 0.0
    %387 = vmatprep.subr.mxu0 0.0
    %388 = vmatpush1.msra.mxu0 0.0
    %389 = vmatprep.subr.mxu0 0.0
    %390 = vmatpush1.msra.mxu0 0.0
    %391 = vmatprep.subr.mxu0 0.0
    %392 = vmatpush1.msra.mxu0 0.0
    %393 = vmatprep.subr.mxu0 0.0
    %394 = vmatpush1.msra.mxu0 0.0
    %395 = vmatprep.subr.mxu0 0.0
    %396 = vmatpush1.msra.mxu0 0.0
    %397 = vmatprep.subr.mxu0 0.0
    %398 = vmatpush1.msra.mxu0 0.0
    %399 = vmatprep.subr.mxu0 0.0
    %400 = vmatpush1.msra.mxu0 0.0
    %401 = vmatprep.subr.mxu0 0.0
    %402 = vmatpush1.msra.mxu0 0.0
    %403 = vmatprep.subr.mxu0 0.0
    %404 = vmatpush1.msra.mxu0 0.0
    %405 = vmatprep.subr.mxu0 0.0
    %406 = vmatpush1.msra.mxu0 0.0
    %407 = vmatprep.subr.mxu0 0.0
    %408 = vmatpush1.msra.mxu0 0.0
    %409 = vmatprep.subr.mxu0 0.0
    %410 = vmatpush1.msra.mxu0 0.0
    %411 = vmatprep.subr.mxu0 0.0
    %412 = vmatpush1.msra.mxu0 0.0
    %413 = vmatprep.subr.mxu0 0.0
    %414 = vmatpush1.msra.mxu0 0.0
    %415 = vmatprep.subr.mxu0 0.0
    %416 = vmatpush1.msra.mxu0 0.0
    %417 = vmatprep.subr.mxu0 0.0
    %418 = vmatpush1.msra.mxu0 0.0
    %419 = vmatprep.mubr.f32.mxu0 0.0
    %v420 = vand.u32 %v99, 4294901760
    %v421 = vsub.f32 %v99, %v420
    %v422 = vand.u32 %v421, 4294901760
    %423 = vmatmul.mubr.f32.gmra.mrb[0].mxu0 %v422
    %v424 = vpop.f32.mrb[0].mxu0
    %v425 = vadd.f32 %v348, %v424
    %v426 = vpop.f32.mrb[0].mxu0
    %427 = vdwg.mxu0
    %428 = vmatprep.subr.mxu0 0.0
    %v429 = vand.u32 %v93, 4294901760
    %v430 = vsub.f32 %v93, %v429
    %v431 = vand.u32 %v430, 4294901760
    %432 = vmatpush1.msra.mxu0 %v431
    %433 = vmatprep.subr.mxu0 0.0
    %v434 = vand.u32 %v94, 4294901760
    %v435 = vsub.f32 %v94, %v434
    %v436 = vand.u32 %v435, 4294901760
    %437 = vmatpush1.msra.mxu0 %v436
    %438 = vmatprep.subr.mxu0 0.0
    %v439 = vand.u32 %v95, 4294901760
    %v440 = vsub.f32 %v95, %v439
    %v441 = vand.u32 %v440, 4294901760
    %442 = vmatpush1.msra.mxu0 %v441
    %443 = vmatprep.subr.mxu0 0.0
    %v444 = vand.u32 %v96, 4294901760
    %v445 = vsub.f32 %v96, %v444
    %v446 = vand.u32 %v445, 4294901760
    %447 = vmatpush1.msra.mxu0 %v446
    %448 = vmatprep.subr.mxu0 0.0
    %449 = vmatpush1.msra.mxu0 0.0
    %450 = vmatprep.subr.mxu0 0.0
    %451 = vmatpush1.msra.mxu0 0.0
    %452 = vmatprep.subr.mxu0 0.0
    %453 = vmatpush1.msra.mxu0 0.0
    %454 = vmatprep.subr.mxu0 0.0
    %455 = vmatpush1.msra.mxu0 0.0
    %456 = vmatprep.subr.mxu0 0.0
    %457 = vmatpush1.msra.mxu0 0.0
    %458 = vmatprep.subr.mxu0 0.0
    %459 = vmatpush1.msra.mxu0 0.0
    %460 = vmatprep.subr.mxu0 0.0
    %461 = vmatpush1.msra.mxu0 0.0
    %462 = vmatprep.subr.mxu0 0.0
    %463 = vmatpush1.msra.mxu0 0.0
    %464 = vmatprep.subr.mxu0 0.0
    %465 = vmatpush1.msra.mxu0 0.0
    %466 = vmatprep.subr.mxu0 0.0
    %467 = vmatpush1.msra.mxu0 0.0
    %468 = vmatprep.subr.mxu0 0.0
    %469 = vmatpush1.msra.mxu0 0.0
    %470 = vmatprep.subr.mxu0 0.0
    %471 = vmatpush1.msra.mxu0 0.0
    %472 = vmatprep.subr.mxu0 0.0
    %473 = vmatpush1.msra.mxu0 0.0
    %474 = vmatprep.subr.mxu0 0.0
    %475 = vmatpush1.msra.mxu0 0.0
    %476 = vmatprep.subr.mxu0 0.0
    %477 = vmatpush1.msra.mxu0 0.0
    %478 = vmatprep.subr.mxu0 0.0
    %479 = vmatpush1.msra.mxu0 0.0
    %480 = vmatprep.subr.mxu0 0.0
    %481 = vmatpush1.msra.mxu0 0.0
    %482 = vmatprep.subr.mxu0 0.0
    %483 = vmatpush1.msra.mxu0 0.0
    %484 = vmatprep.subr.mxu0 0.0
    %485 = vmatpush1.msra.mxu0 0.0
    %486 = vmatprep.subr.mxu0 0.0
    %487 = vmatpush1.msra.mxu0 0.0
    %488 = vmatprep.subr.mxu0 0.0
    %489 = vmatpush1.msra.mxu0 0.0
    %490 = vmatprep.subr.mxu0 0.0
    %491 = vmatpush1.msra.mxu0 0.0
    %492 = vmatprep.subr.mxu0 0.0
    %493 = vmatpush1.msra.mxu0 0.0
    %494 = vmatprep.subr.mxu0 0.0
    %495 = vmatpush1.msra.mxu0 0.0
    %496 = vmatprep.subr.mxu0 0.0
    %497 = vmatpush1.msra.mxu0 0.0
    %498 = vmatprep.subr.mxu0 0.0
    %499 = vmatpush1.msra.mxu0 0.0
    %500 = vmatprep.subr.mxu0 0.0
    %501 = vmatpush1.msra.mxu0 0.0
    %502 = vmatprep.subr.mxu0 0.0
    %503 = vmatpush1.msra.mxu0 0.0
    %504 = vmatprep.mubr.f32.mxu0 0.0
    %v505 = vand.u32 %v99, 4294901760
    %506 = vmatmul.mubr.f32.gmra.mrb[0].mxu0 %v505
    %v507 = vpop.f32.mrb[0].mxu0
    %v508 = vadd.f32 %v425, %v507
    %v509 = vpop.f32.mrb[0].mxu0
    %510 = vdwg.mxu0
    %511 = vmatprep.subr.mxu0 0.0
    %v512 = vand.u32 %v93, 4294901760
    %513 = vmatpush1.msra.mxu0 %v512
    %514 = vmatprep.subr.mxu0 0.0
    %v515 = vand.u32 %v94, 4294901760
    %516 = vmatpush1.msra.mxu0 %v515
    %517 = vmatprep.subr.mxu0 0.0
    %v518 = vand.u32 %v95, 4294901760
    %519 = vmatpush1.msra.mxu0 %v518
    %520 = vmatprep.subr.mxu0 0.0
    %v521 = vand.u32 %v96, 4294901760
    %522 = vmatpush1.msra.mxu0 %v521
    %523 = vmatprep.subr.mxu0 0.0
    %524 = vmatpush1.msra.mxu0 0.0
    %525 = vmatprep.subr.mxu0 0.0
    %526 = vmatpush1.msra.mxu0 0.0
    %527 = vmatprep.subr.mxu0 0.0
    %528 = vmatpush1.msra.mxu0 0.0
    %529 = vmatprep.subr.mxu0 0.0
    %530 = vmatpush1.msra.mxu0 0.0
    %531 = vmatprep.subr.mxu0 0.0
    %532 = vmatpush1.msra.mxu0 0.0
    %533 = vmatprep.subr.mxu0 0.0
    %534 = vmatpush1.msra.mxu0 0.0
    %535 = vmatprep.subr.mxu0 0.0
    %536 = vmatpush1.msra.mxu0 0.0
    %537 = vmatprep.subr.mxu0 0.0
    %538 = vmatpush1.msra.mxu0 0.0
    %539 = vmatprep.subr.mxu0 0.0
    %540 = vmatpush1.msra.mxu0 0.0
    %541 = vmatprep.subr.mxu0 0.0
    %542 = vmatpush1.msra.mxu0 0.0
    %543 = vmatprep.subr.mxu0 0.0
    %544 = vmatpush1.msra.mxu0 0.0
    %545 = vmatprep.subr.mxu0 0.0
    %546 = vmatpush1.msra.mxu0 0.0
    %547 = vmatprep.subr.mxu0 0.0
    %548 = vmatpush1.msra.mxu0 0.0
    %549 = vmatprep.subr.mxu0 0.0
    %550 = vmatpush1.msra.mxu0 0.0
    %551 = vmatprep.subr.mxu0 0.0
    %552 = vmatpush1.msra.mxu0 0.0
    %553 = vmatprep.subr.mxu0 0.0
    %554 = vmatpush1.msra.mxu0 0.0
    %555 = vmatprep.subr.mxu0 0.0
    %556 = vmatpush1.msra.mxu0 0.0
    %557 = vmatprep.subr.mxu0 0.0
    %558 = vmatpush1.msra.mxu0 0.0
    %559 = vmatprep.subr.mxu0 0.0
    %560 = vmatpush1.msra.mxu0 0.0
    %561 = vmatprep.subr.mxu0 0.0
    %562 = vmatpush1.msra.mxu0 0.0
    %563 = vmatprep.subr.mxu0 0.0
    %564 = vmatpush1.msra.mxu0 0.0
    %565 = vmatprep.subr.mxu0 0.0
    %566 = vmatpush1.msra.mxu0 0.0
    %567 = vmatprep.subr.mxu0 0.0
    %568 = vmatpush1.msra.mxu0 0.0
    %569 = vmatprep.subr.mxu0 0.0
    %570 = vmatpush1.msra.mxu0 0.0
    %571 = vmatprep.subr.mxu0 0.0
    %572 = vmatpush1.msra.mxu0 0.0
    %573 = vmatprep.subr.mxu0 0.0
    %574 = vmatpush1.msra.mxu0 0.0
    %575 = vmatprep.subr.mxu0 0.0
    %576 = vmatpush1.msra.mxu0 0.0
    %577 = vmatprep.subr.mxu0 0.0
    %578 = vmatpush1.msra.mxu0 0.0
    %579 = vmatprep.mubr.f32.mxu0 0.0
    %v580 = vand.u32 %v99, 4294901760
    %581 = vmatmul.mubr.f32.gmra.mrb[0].mxu0 %v580
    %v582 = vpop.f32.mrb[0].mxu0
    %v583 = vadd.f32 %v508, %v582
    %v584 = vpop.f32.mrb[0].mxu0
    %585 = vdwg.mxu0
    %vm586 = vcmask 130048
    %v588 = vsel %vm586, %v89, 0
    %590 = vmatprep.subr.mxu0 0.0
    %v591 = vand.u32 %v91, 4294901760
    %592 = vmatpush1.msra.mxu0 %v591
    %593 = vmatprep.subr.mxu0 0.0
    %v594 = vand.u32 %v92, 4294901760
    %595 = vmatpush1.msra.mxu0 %v594
    %596 = vmatprep.subr.mxu0 0.0
    %597 = vmatpush1.msra.mxu0 0.0
    %598 = vmatprep.subr.mxu0 0.0
    %599 = vmatpush1.msra.mxu0 0.0
    %600 = vmatprep.subr.mxu0 0.0
    %601 = vmatpush1.msra.mxu0 0.0
    %602 = vmatprep.subr.mxu0 0.0
    %603 = vmatpush1.msra.mxu0 0.0
    %604 = vmatprep.subr.mxu0 0.0
    %605 = vmatpush1.msra.mxu0 0.0
    %606 = vmatprep.subr.mxu0 0.0
    %607 = vmatpush1.msra.mxu0 0.0
    %608 = vmatprep.subr.mxu0 0.0
    %609 = vmatpush1.msra.mxu0 0.0
    %610 = vmatprep.subr.mxu0 0.0
    %611 = vmatpush1.msra.mxu0 0.0
    %612 = vmatprep.subr.mxu0 0.0
    %613 = vmatpush1.msra.mxu0 0.0
    %614 = vmatprep.subr.mxu0 0.0
    %615 = vmatpush1.msra.mxu0 0.0
    %616 = vmatprep.subr.mxu0 0.0
    %617 = vmatpush1.msra.mxu0 0.0
    %618 = vmatprep.subr.mxu0 0.0
    %619 = vmatpush1.msra.mxu0 0.0
    %620 = vmatprep.subr.mxu0 0.0
    %621 = vmatpush1.msra.mxu0 0.0
    %622 = vmatprep.subr.mxu0 0.0
    %623 = vmatpush1.msra.mxu0 0.0
    %624 = vmatprep.subr.mxu0 0.0
    %625 = vmatpush1.msra.mxu0 0.0
    %626 = vmatprep.subr.mxu0 0.0
    %627 = vmatpush1.msra.mxu0 0.0
    %628 = vmatprep.subr.mxu0 0.0
    %629 = vmatpush1.msra.mxu0 0.0
    %630 = vmatprep.subr.mxu0 0.0
    %631 = vmatpush1.msra.mxu0 0.0
    %632 = vmatprep.subr.mxu0 0.0
    %633 = vmatpush1.msra.mxu0 0.0
    %634 = vmatprep.subr.mxu0 0.0
    %635 = vmatpush1.msra.mxu0 0.0
    %636 = vmatprep.subr.mxu0 0.0
    %637 = vmatpush1.msra.mxu0 0.0
    %638 = vmatprep.subr.mxu0 0.0
    %639 = vmatpush1.msra.mxu0 0.0
    %640 = vmatprep.subr.mxu0 0.0
    %641 = vmatpush1.msra.mxu0 0.0
    %642 = vmatprep.subr.mxu0 0.0
    %643 = vmatpush1.msra.mxu0 0.0
    %644 = vmatprep.subr.mxu0 0.0
    %645 = vmatpush1.msra.mxu0 0.0
    %646 = vmatprep.subr.mxu0 0.0
    %647 = vmatpush1.msra.mxu0 0.0
    %648 = vmatprep.subr.mxu0 0.0
    %649 = vmatpush1.msra.mxu0 0.0
    %650 = vmatprep.subr.mxu0 0.0
    %651 = vmatpush1.msra.mxu0 0.0
    %652 = vmatprep.subr.mxu0 0.0
    %653 = vmatpush1.msra.mxu0 0.0
    %654 = vmatprep.subr.mxu0 0.0
    %655 = vmatpush1.msra.mxu0 0.0
    %656 = vmatprep.mubr.f32.mxu0 0.0
    %v657 = vand.u32 %v588, 4294901760
    %v658 = vsub.f32 %v588, %v657
    %v659 = vand.u32 %v658, 4294901760
    %v660 = vsub.f32 %v658, %v659
    %v661 = vand.u32 %v660, 4294901760
    %662 = vmatmul.mubr.f32.gmra.mrb[0].mxu0 %v661
    %v663 = vpop.f32.mrb[0].mxu0
    %v664 = vadd.f32 %v583, %v663
    %v665 = vpop.f32.mrb[0].mxu0
    %666 = vdwg.mxu0
    %667 = vmatprep.subr.mxu0 0.0
    %v668 = vand.u32 %v91, 4294901760
    %v669 = vsub.f32 %v91, %v668
    %v670 = vand.u32 %v669, 4294901760
    %v671 = vsub.f32 %v669, %v670
    %v672 = vand.u32 %v671, 4294901760
    %673 = vmatpush1.msra.mxu0 %v672
    %674 = vmatprep.subr.mxu0 0.0
    %v675 = vand.u32 %v92, 4294901760
    %v676 = vsub.f32 %v92, %v675
    %v677 = vand.u32 %v676, 4294901760
    %v678 = vsub.f32 %v676, %v677
    %v679 = vand.u32 %v678, 4294901760
    %680 = vmatpush1.msra.mxu0 %v679
    %681 = vmatprep.subr.mxu0 0.0
    %682 = vmatpush1.msra.mxu0 0.0
    %683 = vmatprep.subr.mxu0 0.0
    %684 = vmatpush1.msra.mxu0 0.0
    %685 = vmatprep.subr.mxu0 0.0
    %686 = vmatpush1.msra.mxu0 0.0
    %687 = vmatprep.subr.mxu0 0.0
    %688 = vmatpush1.msra.mxu0 0.0
    %689 = vmatprep.subr.mxu0 0.0
    %690 = vmatpush1.msra.mxu0 0.0
    %691 = vmatprep.subr.mxu0 0.0
    %692 = vmatpush1.msra.mxu0 0.0
    %693 = vmatprep.subr.mxu0 0.0
    %694 = vmatpush1.msra.mxu0 0.0
    %695 = vmatprep.subr.mxu0 0.0
    %696 = vmatpush1.msra.mxu0 0.0
    %697 = vmatprep.subr.mxu0 0.0
    %698 = vmatpush1.msra.mxu0 0.0
    %699 = vmatprep.subr.mxu0 0.0
    %700 = vmatpush1.msra.mxu0 0.0
    %701 = vmatprep.subr.mxu0 0.0
    %702 = vmatpush1.msra.mxu0 0.0
    %703 = vmatprep.subr.mxu0 0.0
    %704 = vmatpush1.msra.mxu0 0.0
    %705 = vmatprep.subr.mxu0 0.0
    %706 = vmatpush1.msra.mxu0 0.0
    %707 = vmatprep.subr.mxu0 0.0
    %708 = vmatpush1.msra.mxu0 0.0
    %709 = vmatprep.subr.mxu0 0.0
    %710 = vmatpush1.msra.mxu0 0.0
    %711 = vmatprep.subr.mxu0 0.0
    %712 = vmatpush1.msra.mxu0 0.0
    %713 = vmatprep.subr.mxu0 0.0
    %714 = vmatpush1.msra.mxu0 0.0
    %715 = vmatprep.subr.mxu0 0.0
    %716 = vmatpush1.msra.mxu0 0.0
    %717 = vmatprep.subr.mxu0 0.0
    %718 = vmatpush1.msra.mxu0 0.0
    %719 = vmatprep.subr.mxu0 0.0
    %720 = vmatpush1.msra.mxu0 0.0
    %721 = vmatprep.subr.mxu0 0.0
    %722 = vmatpush1.msra.mxu0 0.0
    %723 = vmatprep.subr.mxu0 0.0
    %724 = vmatpush1.msra.mxu0 0.0
    %725 = vmatprep.subr.mxu0 0.0
    %726 = vmatpush1.msra.mxu0 0.0
    %727 = vmatprep.subr.mxu0 0.0
    %728 = vmatpush1.msra.mxu0 0.0
    %729 = vmatprep.subr.mxu0 0.0
    %730 = vmatpush1.msra.mxu0 0.0
    %731 = vmatprep.subr.mxu0 0.0
    %732 = vmatpush1.msra.mxu0 0.0
    %733 = vmatprep.subr.mxu0 0.0
    %734 = vmatpush1.msra.mxu0 0.0
    %735 = vmatprep.subr.mxu0 0.0
    %736 = vmatpush1.msra.mxu0 0.0
    %737 = vmatprep.subr.mxu0 0.0
    %738 = vmatpush1.msra.mxu0 0.0
    %739 = vmatprep.subr.mxu0 0.0
    %740 = vmatpush1.msra.mxu0 0.0
    %741 = vmatprep.mubr.f32.mxu0 0.0
    %v742 = vand.u32 %v588, 4294901760
    %743 = vmatmul.mubr.f32.gmra.mrb[0].mxu0 %v742
    %v744 = vpop.f32.mrb[0].mxu0
    %v745 = vadd.f32 %v664, %v744
    %v746 = vpop.f32.mrb[0].mxu0
    %747 = vdwg.mxu0
    %748 = vmatprep.subr.mxu0 0.0
    %v749 = vand.u32 %v91, 4294901760
    %v750 = vsub.f32 %v91, %v749
    %751 = vmatpush1.msra.mxu0 %v750
    %752 = vmatprep.subr.mxu0 0.0
    %v753 = vand.u32 %v92, 4294901760
    %v754 = vsub.f32 %v92, %v753
    %755 = vmatpush1.msra.mxu0 %v754
    %756 = vmatprep.subr.mxu0 0.0
    %757 = vmatpush1.msra.mxu0 0.0
    %758 = vmatprep.subr.mxu0 0.0
    %759 = vmatpush1.msra.mxu0 0.0
    %760 = vmatprep.subr.mxu0 0.0
    %761 = vmatpush1.msra.mxu0 0.0
    %762 = vmatprep.subr.mxu0 0.0
    %763 = vmatpush1.msra.mxu0 0.0
    %764 = vmatprep.subr.mxu0 0.0
    %765 = vmatpush1.msra.mxu0 0.0
    %766 = vmatprep.subr.mxu0 0.0
    %767 = vmatpush1.msra.mxu0 0.0
    %768 = vmatprep.subr.mxu0 0.0
    %769 = vmatpush1.msra.mxu0 0.0
    %770 = vmatprep.subr.mxu0 0.0
    %771 = vmatpush1.msra.mxu0 0.0
    %772 = vmatprep.subr.mxu0 0.0
    %773 = vmatpush1.msra.mxu0 0.0
    %774 = vmatprep.subr.mxu0 0.0
    %775 = vmatpush1.msra.mxu0 0.0
    %776 = vmatprep.subr.mxu0 0.0
    %777 = vmatpush1.msra.mxu0 0.0
    %778 = vmatprep.subr.mxu0 0.0
    %779 = vmatpush1.msra.mxu0 0.0
    %780 = vmatprep.subr.mxu0 0.0
    %781 = vmatpush1.msra.mxu0 0.0
    %782 = vmatprep.subr.mxu0 0.0
    %783 = vmatpush1.msra.mxu0 0.0
    %784 = vmatprep.subr.mxu0 0.0
    %785 = vmatpush1.msra.mxu0 0.0
    %786 = vmatprep.subr.mxu0 0.0
    %787 = vmatpush1.msra.mxu0 0.0
    %788 = vmatprep.subr.mxu0 0.0
    %789 = vmatpush1.msra.mxu0 0.0
    %790 = vmatprep.subr.mxu0 0.0
    %791 = vmatpush1.msra.mxu0 0.0
    %792 = vmatprep.subr.mxu0 0.0
    %793 = vmatpush1.msra.mxu0 0.0
    %794 = vmatprep.subr.mxu0 0.0
    %795 = vmatpush1.msra.mxu0 0.0
    %796 = vmatprep.subr.mxu0 0.0
    %797 = vmatpush1.msra.mxu0 0.0
    %798 = vmatprep.subr.mxu0 0.0
    %799 = vmatpush1.msra.mxu0 0.0
    %800 = vmatprep.subr.mxu0 0.0
    %801 = vmatpush1.msra.mxu0 0.0
    %802 = vmatprep.subr.mxu0 0.0
    %803 = vmatpush1.msra.mxu0 0.0
    %804 = vmatprep.subr.mxu0 0.0
    %805 = vmatpush1.msra.mxu0 0.0
    %806 = vmatprep.subr.mxu0 0.0
    %807 = vmatpush1.msra.mxu0 0.0
    %808 = vmatprep.subr.mxu0 0.0
    %809 = vmatpush1.msra.mxu0 0.0
    %810 = vmatprep.subr.mxu0 0.0
    %811 = vmatpush1.msra.mxu0 0.0
    %812 = vmatprep.subr.mxu0 0.0
    %813 = vmatpush1.msra.mxu0 0.0
    %814 = vmatprep.subr.mxu0 0.0
    %815 = vmatpush1.msra.mxu0 0.0
    %816 = vmatprep.mubr.f32.mxu0 0.0
    %v817 = vand.u32 %v588, 4294901760
    %v818 = vsub.f32 %v588, %v817
    %819 = vmatmul.mubr.f32.gmra.mrb[0].mxu0 %v818
    %v820 = vpop.f32.mrb[0].mxu0
    %v821 = vadd.f32 %v745, %v820
    %v822 = vpop.f32.mrb[0].mxu0
    %823 = vdwg.mxu0
    %824 = vmatprep.subr.mxu0 0.0
    %v825 = vand.u32 %v91, 4294901760
    %826 = vmatpush1.msra.mxu0 %v825
    %827 = vmatprep.subr.mxu0 0.0
    %v828 = vand.u32 %v92, 4294901760
    %829 = vmatpush1.msra.mxu0 %v828
    %830 = vmatprep.subr.mxu0 0.0
    %831 = vmatpush1.msra.mxu0 0.0
    %832 = vmatprep.subr.mxu0 0.0
    %833 = vmatpush1.msra.mxu0 0.0
    %834 = vmatprep.subr.mxu0 0.0
    %835 = vmatpush1.msra.mxu0 0.0
    %836 = vmatprep.subr.mxu0 0.0
    %837 = vmatpush1.msra.mxu0 0.0
    %838 = vmatprep.subr.mxu0 0.0
    %839 = vmatpush1.msra.mxu0 0.0
    %840 = vmatprep.subr.mxu0 0.0
    %841 = vmatpush1.msra.mxu0 0.0
    %842 = vmatprep.subr.mxu0 0.0
    %843 = vmatpush1.msra.mxu0 0.0
    %844 = vmatprep.subr.mxu0 0.0
    %845 = vmatpush1.msra.mxu0 0.0
    %846 = vmatprep.subr.mxu0 0.0
    %847 = vmatpush1.msra.mxu0 0.0
    %848 = vmatprep.subr.mxu0 0.0
    %849 = vmatpush1.msra.mxu0 0.0
    %850 = vmatprep.subr.mxu0 0.0
    %851 = vmatpush1.msra.mxu0 0.0
    %852 = vmatprep.subr.mxu0 0.0
    %853 = vmatpush1.msra.mxu0 0.0
    %854 = vmatprep.subr.mxu0 0.0
    %855 = vmatpush1.msra.mxu0 0.0
    %856 = vmatprep.subr.mxu0 0.0
    %857 = vmatpush1.msra.mxu0 0.0
    %858 = vmatprep.subr.mxu0 0.0
    %859 = vmatpush1.msra.mxu0 0.0
    %860 = vmatprep.subr.mxu0 0.0
    %861 = vmatpush1.msra.mxu0 0.0
    %862 = vmatprep.subr.mxu0 0.0
    %863 = vmatpush1.msra.mxu0 0.0
    %864 = vmatprep.subr.mxu0 0.0
    %865 = vmatpush1.msra.mxu0 0.0
    %866 = vmatprep.subr.mxu0 0.0
    %867 = vmatpush1.msra.mxu0 0.0
    %868 = vmatprep.subr.mxu0 0.0
    %869 = vmatpush1.msra.mxu0 0.0
    %870 = vmatprep.subr.mxu0 0.0
    %871 = vmatpush1.msra.mxu0 0.0
    %872 = vmatprep.subr.mxu0 0.0
    %873 = vmatpush1.msra.mxu0 0.0
    %874 = vmatprep.subr.mxu0 0.0
    %875 = vmatpush1.msra.mxu0 0.0
    %876 = vmatprep.subr.mxu0 0.0
    %877 = vmatpush1.msra.mxu0 0.0
    %878 = vmatprep.subr.mxu0 0.0
    %879 = vmatpush1.msra.mxu0 0.0
    %880 = vmatprep.subr.mxu0 0.0
    %881 = vmatpush1.msra.mxu0 0.0
    %882 = vmatprep.subr.mxu0 0.0
    %883 = vmatpush1.msra.mxu0 0.0
    %884 = vmatprep.subr.mxu0 0.0
    %885 = vmatpush1.msra.mxu0 0.0
    %886 = vmatprep.subr.mxu0 0.0
    %887 = vmatpush1.msra.mxu0 0.0
    %888 = vmatprep.subr.mxu0 0.0
    %889 = vmatpush1.msra.mxu0 0.0
    %890 = vmatprep.mubr.f32.mxu0 0.0
    %v891 = vand.u32 %v588, 4294901760
    %v892 = vsub.f32 %v588, %v891
    %v893 = vand.u32 %v892, 4294901760
    %894 = vmatmul.mubr.f32.gmra.mrb[0].mxu0 %v893
    %v895 = vpop.f32.mrb[0].mxu0
    %v896 = vadd.f32 %v821, %v895
    %v897 = vpop.f32.mrb[0].mxu0
    %898 = vdwg.mxu0
    %899 = vmatprep.subr.mxu0 0.0
    %v900 = vand.u32 %v91, 4294901760
    %v901 = vsub.f32 %v91, %v900
    %v902 = vand.u32 %v901, 4294901760
    %903 = vmatpush1.msra.mxu0 %v902
    %904 = vmatprep.subr.mxu0 0.0
    %v905 = vand.u32 %v92, 4294901760
    %v906 = vsub.f32 %v92, %v905
    %v907 = vand.u32 %v906, 4294901760
    %908 = vmatpush1.msra.mxu0 %v907
    %909 = vmatprep.subr.mxu0 0.0
    %910 = vmatpush1.msra.mxu0 0.0
    %911 = vmatprep.subr.mxu0 0.0
    %912 = vmatpush1.msra.mxu0 0.0
    %913 = vmatprep.subr.mxu0 0.0
    %914 = vmatpush1.msra.mxu0 0.0
    %915 = vmatprep.subr.mxu0 0.0
    %916 = vmatpush1.msra.mxu0 0.0
    %917 = vmatprep.subr.mxu0 0.0
    %918 = vmatpush1.msra.mxu0 0.0
    %919 = vmatprep.subr.mxu0 0.0
    %920 = vmatpush1.msra.mxu0 0.0
    %921 = vmatprep.subr.mxu0 0.0
    %922 = vmatpush1.msra.mxu0 0.0
    %923 = vmatprep.subr.mxu0 0.0
    %924 = vmatpush1.msra.mxu0 0.0
    %925 = vmatprep.subr.mxu0 0.0
    %926 = vmatpush1.msra.mxu0 0.0
    %927 = vmatprep.subr.mxu0 0.0
    %928 = vmatpush1.msra.mxu0 0.0
    %929 = vmatprep.subr.mxu0 0.0
    %930 = vmatpush1.msra.mxu0 0.0
    %931 = vmatprep.subr.mxu0 0.0
    %932 = vmatpush1.msra.mxu0 0.0
    %933 = vmatprep.subr.mxu0 0.0
    %934 = vmatpush1.msra.mxu0 0.0
    %935 = vmatprep.subr.mxu0 0.0
    %936 = vmatpush1.msra.mxu0 0.0
    %937 = vmatprep.subr.mxu0 0.0
    %938 = vmatpush1.msra.mxu0 0.0
    %939 = vmatprep.subr.mxu0 0.0
    %940 = vmatpush1.msra.mxu0 0.0
    %941 = vmatprep.subr.mxu0 0.0
    %942 = vmatpush1.msra.mxu0 0.0
    %943 = vmatprep.subr.mxu0 0.0
    %944 = vmatpush1.msra.mxu0 0.0
    %945 = vmatprep.subr.mxu0 0.0
    %946 = vmatpush1.msra.mxu0 0.0
    %947 = vmatprep.subr.mxu0 0.0
    %948 = vmatpush1.msra.mxu0 0.0
    %949 = vmatprep.subr.mxu0 0.0
    %950 = vmatpush1.msra.mxu0 0.0
    %951 = vmatprep.subr.mxu0 0.0
    %952 = vmatpush1.msra.mxu0 0.0
    %953 = vmatprep.subr.mxu0 0.0
    %954 = vmatpush1.msra.mxu0 0.0
    %955 = vmatprep.subr.mxu0 0.0
    %956 = vmatpush1.msra.mxu0 0.0
    %957 = vmatprep.subr.mxu0 0.0
    %958 = vmatpush1.msra.mxu0 0.0
    %959 = vmatprep.subr.mxu0 0.0
    %960 = vmatpush1.msra.mxu0 0.0
    %961 = vmatprep.subr.mxu0 0.0
    %962 = vmatpush1.msra.mxu0 0.0
    %963 = vmatprep.subr.mxu0 0.0
    %964 = vmatpush1.msra.mxu0 0.0
    %965 = vmatprep.subr.mxu0 0.0
    %966 = vmatpush1.msra.mxu0 0.0
    %967 = vmatprep.subr.mxu0 0.0
    %968 = vmatpush1.msra.mxu0 0.0
    %969 = vmatprep.mubr.f32.mxu0 0.0
    %v970 = vand.u32 %v588, 4294901760
    %971 = vmatmul.mubr.f32.gmra.mrb[0].mxu0 %v970
    %v972 = vpop.f32.mrb[0].mxu0
    %v973 = vadd.f32 %v896, %v972
    %v974 = vpop.f32.mrb[0].mxu0
    %975 = vdwg.mxu0
    %976 = vmatprep.subr.mxu0 0.0
    %v977 = vand.u32 %v91, 4294901760
    %978 = vmatpush1.msra.mxu0 %v977
    %979 = vmatprep.subr.mxu0 0.0
    %v980 = vand.u32 %v92, 4294901760
    %981 = vmatpush1.msra.mxu0 %v980
    %982 = vmatprep.subr.mxu0 0.0
    %983 = vmatpush1.msra.mxu0 0.0
    %984 = vmatprep.subr.mxu0 0.0
    %985 = vmatpush1.msra.mxu0 0.0
    %986 = vmatprep.subr.mxu0 0.0
    %987 = vmatpush1.msra.mxu0 0.0
    %988 = vmatprep.subr.mxu0 0.0
    %989 = vmatpush1.msra.mxu0 0.0
    %990 = vmatprep.subr.mxu0 0.0
    %991 = vmatpush1.msra.mxu0 0.0
    %992 = vmatprep.subr.mxu0 0.0
    %993 = vmatpush1.msra.mxu0 0.0
    %994 = vmatprep.subr.mxu0 0.0
    %995 = vmatpush1.msra.mxu0 0.0
    %996 = vmatprep.subr.mxu0 0.0
    %997 = vmatpush1.msra.mxu0 0.0
    %998 = vmatprep.subr.mxu0 0.0
    %999 = vmatpush1.msra.mxu0 0.0
    %1000 = vmatprep.subr.mxu0 0.0
    %1001 = vmatpush1.msra.mxu0 0.0
    %1002 = vmatprep.subr.mxu0 0.0
    %1003 = vmatpush1.msra.mxu0 0.0
    %1004 = vmatprep.subr.mxu0 0.0
    %1005 = vmatpush1.msra.mxu0 0.0
    %1006 = vmatprep.subr.mxu0 0.0
    %1007 = vmatpush1.msra.mxu0 0.0
    %1008 = vmatprep.subr.mxu0 0.0
    %1009 = vmatpush1.msra.mxu0 0.0
    %1010 = vmatprep.subr.mxu0 0.0
    %1011 = vmatpush1.msra.mxu0 0.0
    %1012 = vmatprep.subr.mxu0 0.0
    %1013 = vmatpush1.msra.mxu0 0.0
    %1014 = vmatprep.subr.mxu0 0.0
    %1015 = vmatpush1.msra.mxu0 0.0
    %1016 = vmatprep.subr.mxu0 0.0
    %1017 = vmatpush1.msra.mxu0 0.0
    %1018 = vmatprep.subr.mxu0 0.0
    %1019 = vmatpush1.msra.mxu0 0.0
    %1020 = vmatprep.subr.mxu0 0.0
    %1021 = vmatpush1.msra.mxu0 0.0
    %1022 = vmatprep.subr.mxu0 0.0
    %1023 = vmatpush1.msra.mxu0 0.0
    %1024 = vmatprep.subr.mxu0 0.0
    %1025 = vmatpush1.msra.mxu0 0.0
    %1026 = vmatprep.subr.mxu0 0.0
    %1027 = vmatpush1.msra.mxu0 0.0
    %1028 = vmatprep.subr.mxu0 0.0
    %1029 = vmatpush1.msra.mxu0 0.0
    %1030 = vmatprep.subr.mxu0 0.0
    %1031 = vmatpush1.msra.mxu0 0.0
    %1032 = vmatprep.subr.mxu0 0.0
    %1033 = vmatpush1.msra.mxu0 0.0
    %1034 = vmatprep.subr.mxu0 0.0
    %1035 = vmatpush1.msra.mxu0 0.0
    %1036 = vmatprep.subr.mxu0 0.0
    %1037 = vmatpush1.msra.mxu0 0.0
    %1038 = vmatprep.subr.mxu0 0.0
    %1039 = vmatpush1.msra.mxu0 0.0
    %1040 = vmatprep.subr.mxu0 0.0
    %1041 = vmatpush1.msra.mxu0 0.0
    %1042 = vmatprep.mubr.f32.mxu0 0.0
    %v1043 = vand.u32 %v588, 4294901760
    %1044 = vmatmul.mubr.f32.gmra.mrb[0].mxu0 %v1043
    %v1045 = vpop.f32.mrb[0].mxu0
    %v1046 = vadd.f32 %v973, %v1045
    %v1047 = vpop.f32.mrb[0].mxu0
    %1048 = vdwg.mxu0
    %v1049 = vld [vmem:[%s5] sm:$0x1]
    %v1051 = vlaneseq
    %v1052 = vshrl.u32 %v1051, 7
    %v1053 = vsub.s32 0, %v1052
    %v1054 = vrot.slane %v1049, %v1053
    %v1056 = vadd.f32 %v1046, %v1054
    %v1057 = vxor.u32 %v1056, 2147483648
    %v1058 = vmul.f32 %v1057, 1.442695
    %v1059 = vpow.pop %v1058
    %v1060 = vadd.f32 %v1059, 1.0
    %v1061 = vrcp.pop %v1060
    %v1062 = vmul.f32 1.0, %v1061
    %v1063 = vtanh.pop %v1056
    %v1064 = vld [vmem:[#allocation7] sm:$0xff]
    %1066 = vrot.lane.b32.xlu0 %v1064, 32
    %v1067 = vpop.permute.xlu0 %1066
    %v1069 = vmul.f32 %v1062, %v1067
    %1071 = vrot.lane.b32.xlu0 %v1063, 64
    %v1072 = vpop.permute.xlu0 %1071
    %v1074 = vmul.f32 %v1062, %v1072
    %1076 = vrot.lane.b32.xlu0 %v1074, 32
    %v1077 = vpop.permute.xlu0 %1076
    %v1079 = vadd.f32 %v1069, %v1077
    %v1080 = vtanh.pop %v1079
    %1082 = vrot.lane.b32.xlu0 %v1080, 64
    %v1083 = vpop.permute.xlu0 %1082
    %v1085 = vmul.f32 %v1062, %v1083
    %1087 = vrot.lane.b32.xlu0 %v1085, 32
    %v1088 = vpop.permute.xlu0 %1087
    %1090 = vst.msk [vmem:[#allocation11] sm:$0xff] %vm97, %v1088
    %1092 = vrot.lane.b32.xlu0 %v1079, 96
    %v1093 = vpop.permute.xlu0 %1092
    %1095 = vst.msk [vmem:[#allocation12] sm:$0xff] %vm97, %v1093
    // Predicated region
    $region46: #{lstm_cell.1} parent=1 // pred_check
      _
    $region47: #{lstm_cell.1} parent=1 // pred_check_branch
      %1097 = sbr.rel (0) target = $region49
    $region48: #{lstm_cell.1} parent=1 // pred_region
      %s1099 = ssub.s32 128, 128
      %1100 = vsyncadd [#allocation4], %s1099
      %s1102 = sshll.u32 [#allocation11], 4
      %s1103 = int_to_ptr.vmem [resolvable:$true] %s1102
      %1105 = dma.vmem_to_hbm [thread:$0]  %s1103, 128, %s6, [#allocation4]
    $region49: #{lstm_cell.1} parent=1 // pred_fallthru
      _
    // Predicated region
    $region50: #{lstm_cell.1} parent=1 // pred_check
      _
    $region51: #{lstm_cell.1} parent=1 // pred_check_branch
      %1107 = sbr.rel (0) target = $region53
    $region52: #{lstm_cell.1} parent=1 // pred_region
      %s1109 = ssub.s32 128, 128
      %1110 = vsyncadd [#allocation13], %s1109
      %s1112 = sshll.u32 [#allocation12], 4
      %s1113 = int_to_ptr.vmem [resolvable:$true] %s1112
      %1115 = dma.vmem_to_hbm [thread:$0]  %s1113, 128, %s7, [#allocation13]
    $region53: #{lstm_cell.1} parent=1 // pred_fallthru
      _
    // Predicated region
    $region54: #{lstm_cell.1} parent=1 // pred_check
      _
    $region55: #{lstm_cell.1} parent=1 // pred_check_branch
      %1117 = sbr.rel (0) target = $region57
    $region56: #{lstm_cell.1} parent=1 // pred_region
      %1118 = dma.done [#allocation4], 128
    $region57: #{lstm_cell.1} parent=1 // pred_fallthru
      _
    // Predicated region
    $region58: #{lstm_cell.1} parent=1 // pred_check
      _
    $region59: #{lstm_cell.1} parent=1 // pred_check_branch
      %1120 = sbr.rel (0) target = $region61
    $region60: #{lstm_cell.1} parent=1 // pred_region
      %1121 = dma.done [#allocation13], 128
    $region61: #{lstm_cell.1} parent=1 // pred_fallthru
      _
    %1122 = vsyncpa [#allocation3], 1
    %1123 = vsyncpa [#allocation6], 1
    %1124 = vsyncpa [#allocation9], 1
    %1125 = vsyncpa [#allocation4], 1
    %1126 = vsyncpa [#allocation13], 1

</llo_original>
